<compile_context>
chip_gen: v7x
topology: tpu7x:2x2x1
jax: 0.10.0
libtpu: 0.0.40
codegen_flags: <defaults>
</compile_context>

<pallas_src>
import functools

import jax
import jax.numpy as jnp
from jax import lax
from jax.experimental import pallas as pl
from jax.experimental.pallas import tpu as pltpu

HIDDEN = 64
_LANES = 128
_SMALL_BATCH = 256   # below this, an XLA forward beats a pallas_call dispatch
_TILE_CAP = 4096     # default max batch tile; VMEM stays at a few MiB


def _round_up(n, m):
    return ((n + m - 1) // m) * m


def _cdiv(a, b):
    return -(-a // b)


def _default_use_bf16():
    """bf16 EUP/VPU exists on v6e/v7x; v5e (and unknown chips) stay f32."""
    try:
        kind = jax.devices()[0].device_kind.lower()
    except Exception:
        return False
    return ("v6" in kind) or ("v7" in kind)


def _select_tile(B, cap):
    """Pick (tb, b_pad): big tiles (low per-step overhead), tail padding
    bounded to <1 tile, and >=2 grid steps when possible (v7x megacore)."""
    b128 = _round_up(B, _LANES)
    n_tiles = max(1, _cdiv(b128, cap))
    if n_tiles == 1 and b128 >= 2 * _LANES:
        n_tiles = 2                       # let both v7x TensorCores work
    tb = _round_up(_cdiv(b128, n_tiles), _LANES)
    b_pad = _round_up(b128, tb)
    return tb, b_pad


def _actor_kernel(discrete, x_ref, w1_ref, b1_ref, w2_ref, b2_ref,
                  w3_ref, b3_ref, o_ref):
    """One batch tile. x_ref is (TB, obs) in natural layout; after fc1 all
    intermediates live in transposed (features, TB) layout so the lane axis
    is the batch tile (lane-dense compute and stores)."""
    x = x_ref[...]                       # (TB, obs), compute dtype (pre-cast)
    w1 = w1_ref[...]                     # (H, obs),  compute dtype (pre-cast)
    cdt = w1.dtype

    # fc1 + tanh: contract the obs axis of both operands -> (H, TB).
    z1 = lax.dot_general(w1, x, (((1,), (1,)), ((), ())),
                         preferred_element_type=jnp.float32) + b1_ref[...]
    h1 = jnp.tanh(z1.astype(cdt))

    # fc2 + tanh: (H, H) @ (H, TB) -> (H, TB)
    z2 = jnp.dot(w2_ref[...], h1,
                 preferred_element_type=jnp.float32) + b2_ref[...]
    h2 = jnp.tanh(z2.astype(cdt))

    # fc3: (A, H) @ (H, TB) -> (A, TB)
    logits = jnp.dot(w3_ref[...], h2,
                     preferred_element_type=jnp.float32) + b3_ref[...]

    if discrete:
        # Numerically stable softmax over the feature (sublane) axis.
        # Exact reciprocal: the divide is a tiny (1, TB) tensor and the
        # probabilities must sum to 1 for downstream Categorical use.
        m = jnp.max(logits, axis=0, keepdims=True)
        e = jnp.exp((logits - m).astype(cdt)).astype(jnp.float32)
        denom = jnp.sum(e, axis=0, keepdims=True)
        out = e * pl.reciprocal(denom, approx=False)
    else:
        out = jnp.tanh(logits.astype(cdt)).astype(jnp.float32)

    o_ref[...] = out.astype(o_ref.dtype)


def actor_forward(x, params, discrete=True, *, tb=None, use_bf16=None,
                  tile_cap=_TILE_CAP, small_batch_xla=True):
    """x: (B, obs_dim) float32. params: PyTorch-layout w1,b1,w2,b2,w3,b3.

    Returns (B, ac_dim) float32: softmax probs (discrete) or tanh means.
    use_bf16=None -> auto (bf16 transcendentals on v6e/v7x, f32 on v5e).
    """
    B, obs_dim = x.shape
    h1_dim = params["w1"].shape[0]
    h2_dim = params["w2"].shape[0]
    ac_dim = params["w3"].shape[0]

    # Tiny batches: pallas dispatch + pad fixed costs dominate; XLA is cheaper.
    if small_batch_xla and B < _SMALL_BATCH:
        return actor_forward_ref(x, params, discrete=discrete)

    if use_bf16 is None:
        use_bf16 = _default_use_bf16()
    cdt = jnp.bfloat16 if use_bf16 else jnp.float32

    if tb is None:
        tb, b_pad = _select_tile(B, tile_cap)
    else:
        tb = max(_LANES, _round_up(tb, _LANES))
        b_pad = _round_up(max(B, tb), tb)

    # Stream x in natural (B, obs) layout (no wrapper transpose); pre-cast to
    # the compute dtype so the bf16 path halves the x DMA bytes.
    x_in = x.astype(cdt)
    if b_pad != B:
        x_in = jnp.pad(x_in, ((0, b_pad - B), (0, 0)))

    # Weights pre-cast once in the wrapper (no per-step VPU recast of the
    # VMEM-resident weights); biases stay f32 (added after f32 accumulate).
    w1 = params["w1"].astype(cdt)
    w2 = params["w2"].astype(cdt)
    w3 = params["w3"].astype(cdt)
    b1 = params["b1"].reshape(h1_dim, 1).astype(jnp.float32)
    b2 = params["b2"].reshape(h2_dim, 1).astype(jnp.float32)
    b3 = params["b3"].reshape(ac_dim, 1).astype(jnp.float32)

    kernel = functools.partial(_actor_kernel, discrete)
    grid = (b_pad // tb,)

    # Constant index_map -> weights/biases stay VMEM-resident across steps.
    def resident(shape):
        return pl.BlockSpec(shape, lambda i: (0, 0))

    out_t = pl.pallas_call(
        kernel,
        out_shape=jax.ShapeDtypeStruct((ac_dim, b_pad), jnp.float32),
        grid=grid,
        in_specs=[
            pl.BlockSpec((tb, obs_dim), lambda i: (i, 0)),   # x tile (natural)
            resident((h1_dim, obs_dim)),                     # w1
            resident((h1_dim, 1)),                           # b1
            resident((h2_dim, h1_dim)),                      # w2
            resident((h2_dim, 1)),                           # b2
            resident((ac_dim, h2_dim)),                      # w3
            resident((ac_dim, 1)),                           # b3
        ],
        out_specs=pl.BlockSpec((ac_dim, tb), lambda i: (0, i)),
        compiler_params=pltpu.CompilerParams(
            dimension_semantics=("parallel",)),
    )(x_in, w1, b1, w2, b2, w3, b3)

    return jnp.transpose(out_t[:, :B])


def init_actor_params(key, obs_dim, ac_dim):
    """Deterministic synthetic init; PyTorch nn.Linear layout and init range."""
    ks = jax.random.split(key, 6)

    def lin(kw, kb, fan_in, fan_out):
        bound = 1.0 / jnp.sqrt(fan_in)
        w = jax.random.uniform(kw, (fan_out, fan_in), jnp.float32,
                               -bound, bound)
        b = jax.random.uniform(kb, (fan_out,), jnp.float32, -bound, bound)
        return w, b

    w1, b1 = lin(ks[0], ks[1], obs_dim, HIDDEN)
    w2, b2 = lin(ks[2], ks[3], HIDDEN, HIDDEN)
    w3, b3 = lin(ks[4], ks[5], HIDDEN, ac_dim)
    return {"w1": w1, "b1": b1, "w2": w2, "b2": b2, "w3": w3, "b3": b3}


def actor_forward_ref(x, params, discrete=True):
    """Pure-JAX reference (PyTorch nn.Linear semantics: y = x W^T + b)."""
    h1 = jnp.tanh(x @ params["w1"].T + params["b1"])
    h2 = jnp.tanh(h1 @ params["w2"].T + params["b2"])
    logits = h2 @ params["w3"].T + params["b3"]
    if discrete:
        return jax.nn.softmax(logits, axis=1)
    return jnp.tanh(logits)


# TODO(synk): act()/get_actions_dist() distribution sampling (Categorical /
# Normal, log-probs) stays outside the kernel, matching the PyTorch forward().

if __name__ == "__main__":
    key = jax.random.PRNGKey(0)
    k_params, k_x, k_xb = jax.random.split(key, 3)

    batch, obs_dim, ac_dim = 2, 16, 8
    params = init_actor_params(k_params, obs_dim, ac_dim)
    x = jax.random.normal(k_x, (batch, obs_dim), dtype=jnp.float32)

    # Small batch: force the Pallas kernel (bypass the XLA fast path), f32.
    out = jax.block_until_ready(
        actor_forward(x, params, discrete=True,
                      use_bf16=False, small_batch_xla=False))
    ref = actor_forward_ref(x, params, discrete=True)
    assert out.shape == (batch, ac_dim)
    assert jnp.allclose(out, ref, atol=1e-4, rtol=1e-4)
    # Exact softmax reciprocal -> probabilities sum to 1.
    assert jnp.allclose(jnp.sum(out, axis=1), 1.0, atol=1e-5)

    # Continuous head (tanh), matching Actor(..., discrete=False).forward(x).
    out_c = jax.block_until_ready(
        actor_forward(x, params, discrete=False,
                      use_bf16=False, small_batch_xla=False))
    ref_c = actor_forward_ref(x, params, discrete=False)
    assert jnp.allclose(out_c, ref_c, atol=1e-4, rtol=1e-4)

    # Larger, non-multiple-of-tile batch: >=2 grid steps (v7x megacore),
    # resident weights, bounded tail padding, auto dtype selection.
    xb = jax.random.normal(k_xb, (300, obs_dim), dtype=jnp.float32)
    ref_b = actor_forward_ref(xb, params, discrete=True)
    out_b = jax.block_until_ready(actor_forward(xb, params, discrete=True))
    assert out_b.shape == (300, ac_dim)
    assert jnp.allclose(out_b, ref_b, atol=5e-2, rtol=5e-2)

    # Explicit f32 path at the same batch (tight tolerance).
    out_b32 = jax.block_until_ready(
        actor_forward(xb, params, discrete=True, use_bf16=False))
    assert jnp.allclose(out_b32, ref_b, atol=1e-4, rtol=1e-4)
    assert jnp.allclose(jnp.sum(out_b32, axis=1), 1.0, atol=1e-5)

    # Explicit bf16 transcendental path (v6e/v7x EUP relief); f32 accumulate.
    out_bf = jax.block_until_ready(
        actor_forward(xb, params, discrete=True, use_bf16=True))
    assert jnp.allclose(out_bf, ref_b, atol=5e-2, rtol=5e-2)

    print("KERNEL_OK")
</pallas_src>

<mosaic_0001>
module attributes {stable_mosaic.version = 11 : i64} {
  func.func @_actor_kernel(%arg0: i32, %arg1: memref<128x16xf32, #tpu.memory_space<vmem>>, %arg2: memref<64x16xf32, #tpu.memory_space<vmem>>, %arg3: memref<64x1xf32, #tpu.memory_space<vmem>>, %arg4: memref<64x64xf32, #tpu.memory_space<vmem>>, %arg5: memref<64x1xf32, #tpu.memory_space<vmem>>, %arg6: memref<8x64xf32, #tpu.memory_space<vmem>>, %arg7: memref<8x1xf32, #tpu.memory_space<vmem>>, %arg8: memref<8x128xf32, #tpu.memory_space<vmem>>) attributes {dimension_semantics = [#tpu.dimension_semantics<parallel>], iteration_bounds = array<i64: 1>, scalar_prefetch = 0 : i64, scratch_operands = 0 : i64, tpu.core_type = #tpu.core_type<tc>, window_params = [{transform_indices = @transform_0, window_bounds = array<i64: 128, 16>}, {pipeline_mode = #tpu.pipeline_mode<synchronous>, transform_indices = @transform_1, window_bounds = array<i64: 64, 16>}, {pipeline_mode = #tpu.pipeline_mode<synchronous>, transform_indices = @transform_2, window_bounds = array<i64: 64, 1>}, {pipeline_mode = #tpu.pipeline_mode<synchronous>, transform_indices = @transform_3, window_bounds = array<i64: 64, 64>}, {pipeline_mode = #tpu.pipeline_mode<synchronous>, transform_indices = @transform_4, window_bounds = array<i64: 64, 1>}, {pipeline_mode = #tpu.pipeline_mode<synchronous>, transform_indices = @transform_5, window_bounds = array<i64: 8, 64>}, {pipeline_mode = #tpu.pipeline_mode<synchronous>, transform_indices = @transform_6, window_bounds = array<i64: 8, 1>}, {transform_indices = @transform_7, window_bounds = array<i64: 8, 128>}]} {
    %c0 = arith.constant 0 : index
    %c0_0 = arith.constant 0 : index
    %0 = vector.load %arg1[%c0, %c0_0] : memref<128x16xf32, #tpu.memory_space<vmem>>, vector<128x16xf32>
    %c0_1 = arith.constant 0 : index
    %c0_2 = arith.constant 0 : index
    %1 = vector.load %arg2[%c0_1, %c0_2] : memref<64x16xf32, #tpu.memory_space<vmem>>, vector<64x16xf32>
    %cst = arith.constant dense<0.000000e+00> : vector<64x128xf32>
    %2 = tpu.matmul %1, %0, %cst {dimension_numbers = #tpu.dot_dimension_numbers<[1], [1], [0], [0], [0, 0, 1, 0], [], []>} : vector<64x16xf32>, vector<128x16xf32>, vector<64x128xf32> -> vector<64x128xf32>
    %c0_3 = arith.constant 0 : index
    %c0_4 = arith.constant 0 : index
    %3 = vector.load %arg3[%c0_3, %c0_4] : memref<64x1xf32, #tpu.memory_space<vmem>>, vector<64x1xf32>
    %4 = vector.broadcast %3 : vector<64x1xf32> to vector<64x128xf32>
    %5 = arith.addf %2, %4 : vector<64x128xf32>
    %6 = math.tanh %5 : vector<64x128xf32>
    %c0_5 = arith.constant 0 : index
    %c0_6 = arith.constant 0 : index
    %7 = vector.load %arg4[%c0_5, %c0_6] : memref<64x64xf32, #tpu.memory_space<vmem>>, vector<64x64xf32>
    %cst_7 = arith.constant dense<0.000000e+00> : vector<64x128xf32>
    %8 = tpu.matmul %7, %6, %cst_7 {dimension_numbers = #tpu.dot_dimension_numbers<[1], [0], [0], [1], [0, 0, 1, 1], [], []>} : vector<64x64xf32>, vector<64x128xf32>, vector<64x128xf32> -> vector<64x128xf32>
    %c0_8 = arith.constant 0 : index
    %c0_9 = arith.constant 0 : index
    %9 = vector.load %arg5[%c0_8, %c0_9] : memref<64x1xf32, #tpu.memory_space<vmem>>, vector<64x1xf32>
    %10 = vector.broadcast %9 : vector<64x1xf32> to vector<64x128xf32>
    %11 = arith.addf %8, %10 : vector<64x128xf32>
    %12 = math.tanh %11 : vector<64x128xf32>
    %c0_10 = arith.constant 0 : index
    %c0_11 = arith.constant 0 : index
    %13 = vector.load %arg6[%c0_10, %c0_11] : memref<8x64xf32, #tpu.memory_space<vmem>>, vector<8x64xf32>
    %cst_12 = arith.constant dense<0.000000e+00> : vector<8x128xf32>
    %14 = tpu.matmul %13, %12, %cst_12 {dimension_numbers = #tpu.dot_dimension_numbers<[1], [0], [0], [1], [0, 0, 1, 1], [], []>} : vector<8x64xf32>, vector<64x128xf32>, vector<8x128xf32> -> vector<8x128xf32>
    %c0_13 = arith.constant 0 : index
    %c0_14 = arith.constant 0 : index
    %15 = vector.load %arg7[%c0_13, %c0_14] : memref<8x1xf32, #tpu.memory_space<vmem>>, vector<8x1xf32>
    %16 = vector.broadcast %15 : vector<8x1xf32> to vector<8x128xf32>
    %17 = arith.addf %14, %16 : vector<8x128xf32>
    %cst_15 = arith.constant dense<0xFF800000> : vector<128xf32>
    %18 = vector.multi_reduction <maximumf>, %17, %cst_15 [0] : vector<8x128xf32> to vector<128xf32>
    %19 = vector.shape_cast %18 : vector<128xf32> to vector<1x128xf32>
    %20 = vector.broadcast %19 : vector<1x128xf32> to vector<8x128xf32>
    %21 = arith.subf %17, %20 : vector<8x128xf32>
    %22 = math.exp %21 : vector<8x128xf32>
    %cst_16 = arith.constant dense<0.000000e+00> : vector<128xf32>
    %23 = vector.multi_reduction <add>, %22, %cst_16 [0] : vector<8x128xf32> to vector<128xf32>
    %24 = vector.shape_cast %23 : vector<128xf32> to vector<1x128xf32>
    %25 = tpu.reciprocal %24 : vector<1x128xf32> -> vector<1x128xf32>
    %26 = vector.broadcast %25 : vector<1x128xf32> to vector<8x128xf32>
    %27 = arith.mulf %22, %26 : vector<8x128xf32>
    %c0_17 = arith.constant 0 : index
    %c0_18 = arith.constant 0 : index
    %28 = vector.load %arg8[%c0_17, %c0_18] : memref<8x128xf32, #tpu.memory_space<vmem>>, vector<8x128xf32>
    tpu.vector_store %arg8[%c0_17, %c0_18], %27 {strides = array<i32>} : memref<8x128xf32, #tpu.memory_space<vmem>>, vector<8x128xf32>,
    return
  }
  func.func @transform_0(%arg0: i32) -> (i32, i32) {
    %c0_i32 = arith.constant 0 : i32
    %c0_i32_0 = arith.constant 0 : i32
    return %arg0, %c0_i32 : i32, i32
  }
  func.func @transform_1(%arg0: i32) -> (i32, i32) {
    %c0_i32 = arith.constant 0 : i32
    %c0_i32_0 = arith.constant 0 : i32
    %c0_i32_1 = arith.constant 0 : i32
    return %c0_i32, %c0_i32_0 : i32, i32
  }
  func.func @transform_2(%arg0: i32) -> (i32, i32) {
    %c0_i32 = arith.constant 0 : i32
    %c0_i32_0 = arith.constant 0 : i32
    %c0_i32_1 = arith.constant 0 : i32
    return %c0_i32, %c0_i32_0 : i32, i32
  }
  func.func @transform_3(%arg0: i32) -> (i32, i32) {
    %c0_i32 = arith.constant 0 : i32
    %c0_i32_0 = arith.constant 0 : i32
    %c0_i32_1 = arith.constant 0 : i32
    return %c0_i32, %c0_i32_0 : i32, i32
  }
  func.func @transform_4(%arg0: i32) -> (i32, i32) {
    %c0_i32 = arith.constant 0 : i32
    %c0_i32_0 = arith.constant 0 : i32
    %c0_i32_1 = arith.constant 0 : i32
    return %c0_i32, %c0_i32_0 : i32, i32
  }
  func.func @transform_5(%arg0: i32) -> (i32, i32) {
    %c0_i32 = arith.constant 0 : i32
    %c0_i32_0 = arith.constant 0 : i32
    %c0_i32_1 = arith.constant 0 : i32
    return %c0_i32, %c0_i32_0 : i32, i32
  }
  func.func @transform_6(%arg0: i32) -> (i32, i32) {
    %c0_i32 = arith.constant 0 : i32
    %c0_i32_0 = arith.constant 0 : i32
    %c0_i32_1 = arith.constant 0 : i32
    return %c0_i32, %c0_i32_0 : i32, i32
  }
  func.func @transform_7(%arg0: i32) -> (i32, i32) {
    %c0_i32 = arith.constant 0 : i32
    %c0_i32_0 = arith.constant 0 : i32
    return %c0_i32, %arg0 : i32, i32
  }
}

</mosaic_0001>

<llo_original>
// kernel: tpu_custom_call.1
$region0: #{tpu_custom_call.1}
  #allocation0 [shape = 'u32[]', space=smem, size = 0x4, offset = 0x4, fixed_abs, tag = 'smem constant byte address 0x4 - core index']
  #allocation1 [shape = 'u32[144,128]{1,0:T(1,128)}', space=vmem, size = 0x12000, scoped, tag = 'internal scratch']
  %s0 = inlined_call_operand.vmem [shape: f32[128,16], index: 0, kind: input, shape index: {}]
  %s1 = inlined_call_operand.vmem [shape: f32[64,16], index: 1, kind: input, shape index: {}]
  %s2 = inlined_call_operand.vmem [shape: f32[64,1], index: 2, kind: input, shape index: {}]
  %s3 = inlined_call_operand.vmem [shape: f32[64,64], index: 3, kind: input, shape index: {}]
  %s4 = inlined_call_operand.vmem [shape: f32[64,1], index: 4, kind: input, shape index: {}]
  %s5 = inlined_call_operand.vmem [shape: f32[8,64], index: 5, kind: input, shape index: {}]
  %s6 = inlined_call_operand.vmem [shape: f32[8,1], index: 6, kind: input, shape index: {}]
  %s7 = inlined_call_operand.hbm [shape: f32[8,128], index: 7, kind: output, shape index: {}]
  %s8 = sld [smem:[#allocation0]]
  $region38: #{tpu_custom_call.1} parent=0
    _
  %s10 = ssub.s32 1, %s8
  %s11 = scalar_select 0, %s10, %s8
  $region1: #{tpu_custom_call.1} parent=0
    #allocation2 [shape = 'u8[4096]{0}', space=vmem, size = 0x1000, scoped, tag = 'output window, operand 0, single buffered']
    #allocation3 [shape = 's32[1]{0}', space=sflag, size = 0x4, scoped, tag = 'scoped memory for tpu_custom_call.1']
    %12 = vsyncpa [#allocation3], 0
    // Predicated region
    $region2: #{tpu_custom_call.1} parent=1 // pred_check
      _
    $region3: #{tpu_custom_call.1} parent=1 // pred_check_branch
      %14 = sbr.rel (0) target = $region5
    $region4: #{tpu_custom_call.1} parent=1 // pred_region
      _
    $region5: #{tpu_custom_call.1} parent=1 // pred_fallthru
      _
    // Predicated region
    $region6: #{tpu_custom_call.1} parent=1 // pred_check
      _
    $region7: #{tpu_custom_call.1} parent=1 // pred_check_branch
      %16 = sbr.rel (0) target = $region9
    $region8: #{tpu_custom_call.1} parent=1 // pred_region
      _
    $region9: #{tpu_custom_call.1} parent=1 // pred_fallthru
      _
    // Predicated region
    $region10: #{tpu_custom_call.1} parent=1 // pred_check
      _
    $region11: #{tpu_custom_call.1} parent=1 // pred_check_branch
      %18 = sbr.rel (0) target = $region13
    $region12: #{tpu_custom_call.1} parent=1 // pred_region
      _
    $region13: #{tpu_custom_call.1} parent=1 // pred_fallthru
      _
    // Predicated region
    $region14: #{tpu_custom_call.1} parent=1 // pred_check
      _
    $region15: #{tpu_custom_call.1} parent=1 // pred_check_branch
      %20 = sbr.rel (0) target = $region17
    $region16: #{tpu_custom_call.1} parent=1 // pred_region
      _
    $region17: #{tpu_custom_call.1} parent=1 // pred_fallthru
      _
    // Predicated region
    $region18: #{tpu_custom_call.1} parent=1 // pred_check
      _
    $region19: #{tpu_custom_call.1} parent=1 // pred_check_branch
      %22 = sbr.rel (0) target = $region21
    $region20: #{tpu_custom_call.1} parent=1 // pred_region
      _
    $region21: #{tpu_custom_call.1} parent=1 // pred_fallthru
      _
    // Predicated region
    $region22: #{tpu_custom_call.1} parent=1 // pred_check
      _
    $region23: #{tpu_custom_call.1} parent=1 // pred_check_branch
      %24 = sbr.rel (0) target = $region25
    $region24: #{tpu_custom_call.1} parent=1 // pred_region
      _
    $region25: #{tpu_custom_call.1} parent=1 // pred_fallthru
      _
    // Predicated region
    $region26: #{tpu_custom_call.1} parent=1 // pred_check
      _
    $region27: #{tpu_custom_call.1} parent=1 // pred_check_branch
      %26 = sbr.rel (0) target = $region29
    $region28: #{tpu_custom_call.1} parent=1 // pred_region
      _
    $region29: #{tpu_custom_call.1} parent=1 // pred_fallthru
      _
    %v27 = vld [vmem:[%s0] sm:$0xff]
    %v28 = vld [vmem:[%s0 + $0x8] sm:$0xff]
    %v29 = vld [vmem:[%s0 + $0x10] sm:$0xff]
    %v30 = vld [vmem:[%s0 + $0x18] sm:$0xff]
    %v31 = vld [vmem:[%s0 + $0x20] sm:$0xff]
    %v32 = vld [vmem:[%s0 + $0x28] sm:$0xff]
    %v33 = vld [vmem:[%s0 + $0x30] sm:$0xff]
    %v34 = vld [vmem:[%s0 + $0x38] sm:$0xff]
    %v35 = vld [vmem:[%s0 + $0x40] sm:$0xff]
    %v36 = vld [vmem:[%s0 + $0x48] sm:$0xff]
    %v37 = vld [vmem:[%s0 + $0x50] sm:$0xff]
    %v38 = vld [vmem:[%s0 + $0x58] sm:$0xff]
    %v39 = vld [vmem:[%s0 + $0x60] sm:$0xff]
    %v40 = vld [vmem:[%s0 + $0x68] sm:$0xff]
    %v41 = vld [vmem:[%s0 + $0x70] sm:$0xff]
    %v42 = vld [vmem:[%s0 + $0x78] sm:$0xff]
    %v43 = vld [vmem:[%s1] sm:$0xff]
    %v44 = vld [vmem:[%s1 + $0x8] sm:$0xff]
    %v45 = vld [vmem:[%s1 + $0x10] sm:$0xff]
    %v46 = vld [vmem:[%s1 + $0x18] sm:$0xff]
    %v47 = vld [vmem:[%s1 + $0x20] sm:$0xff]
    %v48 = vld [vmem:[%s1 + $0x28] sm:$0xff]
    %v49 = vld [vmem:[%s1 + $0x30] sm:$0xff]
    %v50 = vld [vmem:[%s1 + $0x38] sm:$0xff]
    %v51 = vld [vmem:[%s2] sm:$0xff]
    %v52 = vld [vmem:[%s2 + $0x8] sm:$0xff]
    %v53 = vld [vmem:[%s2 + $0x10] sm:$0xff]
    %v54 = vld [vmem:[%s2 + $0x18] sm:$0xff]
    %v55 = vld [vmem:[%s2 + $0x20] sm:$0xff]
    %v56 = vld [vmem:[%s2 + $0x28] sm:$0xff]
    %v57 = vld [vmem:[%s2 + $0x30] sm:$0xff]
    %v58 = vld [vmem:[%s2 + $0x38] sm:$0xff]
    %60 = vset.pattern.permute.xlu0 0
    %61 = vperm.xlu0 %60, %v51
    %v62 = vpop.permute.xlu0 %61
    %65 = vset.pattern.permute.xlu0 0
    %66 = vperm.xlu0 %65, %v52
    %v67 = vpop.permute.xlu0 %66
    %70 = vset.pattern.permute.xlu0 0
    %71 = vperm.xlu0 %70, %v53
    %v72 = vpop.permute.xlu0 %71
    %75 = vset.pattern.permute.xlu0 0
    %76 = vperm.xlu0 %75, %v54
    %v77 = vpop.permute.xlu0 %76
    %80 = vset.pattern.permute.xlu0 0
    %81 = vperm.xlu0 %80, %v55
    %v82 = vpop.permute.xlu0 %81
    %85 = vset.pattern.permute.xlu0 0
    %86 = vperm.xlu0 %85, %v56
    %v87 = vpop.permute.xlu0 %86
    %90 = vset.pattern.permute.xlu0 0
    %91 = vperm.xlu0 %90, %v57
    %v92 = vpop.permute.xlu0 %91
    %95 = vset.pattern.permute.xlu0 0
    %96 = vperm.xlu0 %95, %v58
    %v97 = vpop.permute.xlu0 %96
    %vm99 = vcmask 130048
    %v101 = vsel %vm99, %v43, 0
    %v104 = vsel %vm99, %v44, 0
    %v107 = vsel %vm99, %v45, 0
    %v110 = vsel %vm99, %v46, 0
    %v113 = vsel %vm99, %v47, 0
    %v116 = vsel %vm99, %v48, 0
    %v119 = vsel %vm99, %v49, 0
    %v122 = vsel %vm99, %v50, 0
    %v125 = vsel %vm99, %v27, 0
    %v128 = vsel %vm99, %v28, 0
    %v131 = vsel %vm99, %v29, 0
    %v134 = vsel %vm99, %v30, 0
    %v137 = vsel %vm99, %v31, 0
    %v140 = vsel %vm99, %v32, 0
    %v143 = vsel %vm99, %v33, 0
    %v146 = vsel %vm99, %v34, 0
    %v149 = vsel %vm99, %v35, 0
    %v152 = vsel %vm99, %v36, 0
    %v155 = vsel %vm99, %v37, 0
    %v158 = vsel %vm99, %v38, 0
    %v161 = vsel %vm99, %v39, 0
    %v164 = vsel %vm99, %v40, 0
    %v167 = vsel %vm99, %v41, 0
    %v170 = vsel %vm99, %v42, 0
    %172 = vmatprep.subr.mxu0 0.0
    %173 = vmatpush1.xpose.msra.mxu0 %v125
    %174 = vmatprep.subr.mxu0 0.0
    %175 = vmatpush1.xpose.msra.mxu0 %v128
    %176 = vmatprep.subr.mxu0 0.0
    %177 = vmatpush1.xpose.msra.mxu0 %v131
    %178 = vmatprep.subr.mxu0 0.0
    %179 = vmatpush1.xpose.msra.mxu0 %v134
    %180 = vmatprep.subr.mxu0 0.0
    %181 = vmatpush1.xpose.msra.mxu0 %v137
    %182 = vmatprep.subr.mxu0 0.0
    %183 = vmatpush1.xpose.msra.mxu0 %v140
    %184 = vmatprep.subr.mxu0 0.0
    %185 = vmatpush1.xpose.msra.mxu0 %v143
    %186 = vmatprep.subr.mxu0 0.0
    %187 = vmatpush1.xpose.msra.mxu0 %v146
    %188 = vmatprep.subr.mxu0 0.0
    %189 = vmatpush1.xpose.msra.mxu0 %v149
    %190 = vmatprep.subr.mxu0 0.0
    %191 = vmatpush1.xpose.msra.mxu0 %v152
    %192 = vmatprep.subr.mxu0 0.0
    %193 = vmatpush1.xpose.msra.mxu0 %v155
    %194 = vmatprep.subr.mxu0 0.0
    %195 = vmatpush1.xpose.msra.mxu0 %v158
    %196 = vmatprep.subr.mxu0 0.0
    %197 = vmatpush1.xpose.msra.mxu0 %v161
    %198 = vmatprep.subr.mxu0 0.0
    %199 = vmatpush1.xpose.msra.mxu0 %v164
    %200 = vmatprep.subr.mxu0 0.0
    %201 = vmatpush1.xpose.msra.mxu0 %v167
    %202 = vmatprep.subr.mxu0 0.0
    %203 = vmatpush1.xpose.msra.mxu0 %v170
    %204 = vmatprep.subr.mxu0 0.0
    %205 = vmatpush1.xpose.msra.mxu0 0.0
    %206 = vmatprep.subr.mxu0 0.0
    %207 = vmatpush1.xpose.msra.mxu0 0.0
    %208 = vmatprep.subr.mxu0 0.0
    %209 = vmatpush1.xpose.msra.mxu0 0.0
    %210 = vmatprep.subr.mxu0 0.0
    %211 = vmatpush1.xpose.msra.mxu0 0.0
    %212 = vmatprep.subr.mxu0 0.0
    %213 = vmatpush1.xpose.msra.mxu0 0.0
    %214 = vmatprep.subr.mxu0 0.0
    %215 = vmatpush1.xpose.msra.mxu0 0.0
    %216 = vmatprep.subr.mxu0 0.0
    %217 = vmatpush1.xpose.msra.mxu0 0.0
    %218 = vmatprep.subr.mxu0 0.0
    %219 = vmatpush1.xpose.msra.mxu0 0.0
    %220 = vmatprep.subr.mxu0 0.0
    %221 = vmatpush1.xpose.msra.mxu0 0.0
    %222 = vmatprep.subr.mxu0 0.0
    %223 = vmatpush1.xpose.msra.mxu0 0.0
    %224 = vmatprep.subr.mxu0 0.0
    %225 = vmatpush1.xpose.msra.mxu0 0.0
    %226 = vmatprep.subr.mxu0 0.0
    %227 = vmatpush1.xpose.msra.mxu0 0.0
    %228 = vmatprep.subr.mxu0 0.0
    %229 = vmatpush1.xpose.msra.mxu0 0.0
    %230 = vmatprep.subr.mxu0 0.0
    %231 = vmatpush1.xpose.msra.mxu0 0.0
    %232 = vmatprep.subr.mxu0 0.0
    %233 = vmatpush1.xpose.msra.mxu0 0.0
    %234 = vmatprep.subr.mxu0 0.0
    %235 = vmatpush1.xpose.msra.mxu0 0.0
    %236 = vmatprep.mubr.f32.mxu0 0.0
    %237 = vmatmul.mubr.f32.gmra.mrb[0].mxu0 %v101
    %v238 = vpop.f32.mrb[0].mxu0
    %v239 = vadd.f32 %v62, %v238
    %v240 = vpop.f32.mrb[0].mxu0
    %241 = vmatprep.mubr.f32.mxu0 0.0
    %242 = vmatmul.mubr.f32.gmra.mrb[0].mxu0 %v104
    %v243 = vpop.f32.mrb[0].mxu0
    %v244 = vadd.f32 %v67, %v243
    %v245 = vpop.f32.mrb[0].mxu0
    %246 = vmatprep.mubr.f32.mxu0 0.0
    %247 = vmatmul.mubr.f32.gmra.mrb[0].mxu0 %v107
    %v248 = vpop.f32.mrb[0].mxu0
    %v249 = vadd.f32 %v72, %v248
    %v250 = vpop.f32.mrb[0].mxu0
    %251 = vmatprep.mubr.f32.mxu0 0.0
    %252 = vmatmul.mubr.f32.gmra.mrb[0].mxu0 %v110
    %v253 = vpop.f32.mrb[0].mxu0
    %v254 = vadd.f32 %v77, %v253
    %v255 = vpop.f32.mrb[0].mxu0
    %256 = vmatprep.mubr.f32.mxu0 0.0
    %257 = vmatmul.mubr.f32.gmra.mrb[0].mxu0 %v113
    %v258 = vpop.f32.mrb[0].mxu0
    %v259 = vadd.f32 %v82, %v258
    %v260 = vpop.f32.mrb[0].mxu0
    %261 = vmatprep.mubr.f32.mxu0 0.0
    %262 = vmatmul.mubr.f32.gmra.mrb[0].mxu0 %v116
    %v263 = vpop.f32.mrb[0].mxu0
    %v264 = vadd.f32 %v87, %v263
    %v265 = vpop.f32.mrb[0].mxu0
    %266 = vmatprep.mubr.f32.mxu0 0.0
    %267 = vmatmul.mubr.f32.gmra.mrb[0].mxu0 %v119
    %v268 = vpop.f32.mrb[0].mxu0
    %v269 = vadd.f32 %v92, %v268
    %v270 = vpop.f32.mrb[0].mxu0
    %271 = vmatprep.mubr.f32.mxu0 0.0
    %272 = vmatmul.mubr.f32.gmra.mrb[0].mxu0 %v122
    %v273 = vpop.f32.mrb[0].mxu0
    %v274 = vadd.f32 %v97, %v273
    %v275 = vpop.f32.mrb[0].mxu0
    %276 = vdwg.mxu0
    %v277 = vtanh.pop %v239
    %v278 = vtanh.pop %v244
    %v279 = vtanh.pop %v249
    %v280 = vtanh.pop %v254
    %v281 = vtanh.pop %v259
    %v282 = vtanh.pop %v264
    %v283 = vtanh.pop %v269
    %v284 = vtanh.pop %v274
    %v285 = vld [vmem:[%s3] sm:$0xff]
    %v286 = vld [vmem:[%s3 + $0x8] sm:$0xff]
    %v287 = vld [vmem:[%s3 + $0x10] sm:$0xff]
    %v288 = vld [vmem:[%s3 + $0x18] sm:$0xff]
    %v289 = vld [vmem:[%s3 + $0x20] sm:$0xff]
    %v290 = vld [vmem:[%s3 + $0x28] sm:$0xff]
    %v291 = vld [vmem:[%s3 + $0x30] sm:$0xff]
    %v292 = vld [vmem:[%s3 + $0x38] sm:$0xff]
    %v293 = vld [vmem:[%s4] sm:$0xff]
    %v294 = vld [vmem:[%s4 + $0x8] sm:$0xff]
    %v295 = vld [vmem:[%s4 + $0x10] sm:$0xff]
    %v296 = vld [vmem:[%s4 + $0x18] sm:$0xff]
    %v297 = vld [vmem:[%s4 + $0x20] sm:$0xff]
    %v298 = vld [vmem:[%s4 + $0x28] sm:$0xff]
    %v299 = vld [vmem:[%s4 + $0x30] sm:$0xff]
    %v300 = vld [vmem:[%s4 + $0x38] sm:$0xff]
    %302 = vset.pattern.permute.xlu0 0
    %303 = vperm.xlu0 %302, %v293
    %v304 = vpop.permute.xlu0 %303
    %307 = vset.pattern.permute.xlu0 0
    %308 = vperm.xlu0 %307, %v294
    %v309 = vpop.permute.xlu0 %308
    %312 = vset.pattern.permute.xlu0 0
    %313 = vperm.xlu0 %312, %v295
    %v314 = vpop.permute.xlu0 %313
    %317 = vset.pattern.permute.xlu0 0
    %318 = vperm.xlu0 %317, %v296
    %v319 = vpop.permute.xlu0 %318
    %322 = vset.pattern.permute.xlu0 0
    %323 = vperm.xlu0 %322, %v297
    %v324 = vpop.permute.xlu0 %323
    %327 = vset.pattern.permute.xlu0 0
    %328 = vperm.xlu0 %327, %v298
    %v329 = vpop.permute.xlu0 %328
    %332 = vset.pattern.permute.xlu0 0
    %333 = vperm.xlu0 %332, %v299
    %v334 = vpop.permute.xlu0 %333
    %337 = vset.pattern.permute.xlu0 0
    %338 = vperm.xlu0 %337, %v300
    %v339 = vpop.permute.xlu0 %338
    %vm341 = vcmask 523264
    %v343 = vsel %vm341, %v285, 0
    %v346 = vsel %vm341, %v286, 0
    %v349 = vsel %vm341, %v287, 0
    %v352 = vsel %vm341, %v288, 0
    %v355 = vsel %vm341, %v289, 0
    %v358 = vsel %vm341, %v290, 0
    %v361 = vsel %vm341, %v291, 0
    %v364 = vsel %vm341, %v292, 0
    %366 = vmatprep.subr.mxu0 0.0
    %367 = vmatpush1.msra.mxu0 %v277
    %368 = vmatprep.subr.mxu0 0.0
    %369 = vmatpush1.msra.mxu0 %v278
    %370 = vmatprep.subr.mxu0 0.0
    %371 = vmatpush1.msra.mxu0 %v279
    %372 = vmatprep.subr.mxu0 0.0
    %373 = vmatpush1.msra.mxu0 %v280
    %374 = vmatprep.subr.mxu0 0.0
    %375 = vmatpush1.msra.mxu0 %v281
    %376 = vmatprep.subr.mxu0 0.0
    %377 = vmatpush1.msra.mxu0 %v282
    %378 = vmatprep.subr.mxu0 0.0
    %379 = vmatpush1.msra.mxu0 %v283
    %380 = vmatprep.subr.mxu0 0.0
    %381 = vmatpush1.msra.mxu0 %v284
    %382 = vmatprep.subr.mxu0 0.0
    %383 = vmatpush1.msra.mxu0 0.0
    %384 = vmatprep.subr.mxu0 0.0
    %385 = vmatpush1.msra.mxu0 0.0
    %386 = vmatprep.subr.mxu0 0.0
    %387 = vmatpush1.msra.mxu0 0.0
    %388 = vmatprep.subr.mxu0 0.0
    %389 = vmatpush1.msra.mxu0 0.0
    %390 = vmatprep.subr.mxu0 0.0
    %391 = vmatpush1.msra.mxu0 0.0
    %392 = vmatprep.subr.mxu0 0.0
    %393 = vmatpush1.msra.mxu0 0.0
    %394 = vmatprep.subr.mxu0 0.0
    %395 = vmatpush1.msra.mxu0 0.0
    %396 = vmatprep.subr.mxu0 0.0
    %397 = vmatpush1.msra.mxu0 0.0
    %398 = vmatprep.subr.mxu0 0.0
    %399 = vmatpush1.msra.mxu0 0.0
    %400 = vmatprep.subr.mxu0 0.0
    %401 = vmatpush1.msra.mxu0 0.0
    %402 = vmatprep.subr.mxu0 0.0
    %403 = vmatpush1.msra.mxu0 0.0
    %404 = vmatprep.subr.mxu0 0.0
    %405 = vmatpush1.msra.mxu0 0.0
    %406 = vmatprep.subr.mxu0 0.0
    %407 = vmatpush1.msra.mxu0 0.0
    %408 = vmatprep.subr.mxu0 0.0
    %409 = vmatpush1.msra.mxu0 0.0
    %410 = vmatprep.subr.mxu0 0.0
    %411 = vmatpush1.msra.mxu0 0.0
    %412 = vmatprep.subr.mxu0 0.0
    %413 = vmatpush1.msra.mxu0 0.0
    %414 = vmatprep.subr.mxu0 0.0
    %415 = vmatpush1.msra.mxu0 0.0
    %416 = vmatprep.subr.mxu0 0.0
    %417 = vmatpush1.msra.mxu0 0.0
    %418 = vmatprep.subr.mxu0 0.0
    %419 = vmatpush1.msra.mxu0 0.0
    %420 = vmatprep.subr.mxu0 0.0
    %421 = vmatpush1.msra.mxu0 0.0
    %422 = vmatprep.subr.mxu0 0.0
    %423 = vmatpush1.msra.mxu0 0.0
    %424 = vmatprep.subr.mxu0 0.0
    %425 = vmatpush1.msra.mxu0 0.0
    %426 = vmatprep.subr.mxu0 0.0
    %427 = vmatpush1.msra.mxu0 0.0
    %428 = vmatprep.subr.mxu0 0.0
    %429 = vmatpush1.msra.mxu0 0.0
    %430 = vmatprep.mubr.f32.mxu0 0.0
    %431 = vmatmul.mubr.f32.gmra.mrb[0].mxu0 %v343
    %v432 = vpop.f32.mrb[0].mxu0
    %v433 = vadd.f32 %v304, %v432
    %v434 = vpop.f32.mrb[0].mxu0
    %435 = vmatprep.mubr.f32.mxu0 0.0
    %436 = vmatmul.mubr.f32.gmra.mrb[0].mxu0 %v346
    %v437 = vpop.f32.mrb[0].mxu0
    %v438 = vadd.f32 %v309, %v437
    %v439 = vpop.f32.mrb[0].mxu0
    %440 = vmatprep.mubr.f32.mxu0 0.0
    %441 = vmatmul.mubr.f32.gmra.mrb[0].mxu0 %v349
    %v442 = vpop.f32.mrb[0].mxu0
    %v443 = vadd.f32 %v314, %v442
    %v444 = vpop.f32.mrb[0].mxu0
    %445 = vmatprep.mubr.f32.mxu0 0.0
    %446 = vmatmul.mubr.f32.gmra.mrb[0].mxu0 %v352
    %v447 = vpop.f32.mrb[0].mxu0
    %v448 = vadd.f32 %v319, %v447
    %v449 = vpop.f32.mrb[0].mxu0
    %450 = vmatprep.mubr.f32.mxu0 0.0
    %451 = vmatmul.mubr.f32.gmra.mrb[0].mxu0 %v355
    %v452 = vpop.f32.mrb[0].mxu0
    %v453 = vadd.f32 %v324, %v452
    %v454 = vpop.f32.mrb[0].mxu0
    %455 = vmatprep.mubr.f32.mxu0 0.0
    %456 = vmatmul.mubr.f32.gmra.mrb[0].mxu0 %v358
    %v457 = vpop.f32.mrb[0].mxu0
    %v458 = vadd.f32 %v329, %v457
    %v459 = vpop.f32.mrb[0].mxu0
    %460 = vmatprep.mubr.f32.mxu0 0.0
    %461 = vmatmul.mubr.f32.gmra.mrb[0].mxu0 %v361
    %v462 = vpop.f32.mrb[0].mxu0
    %v463 = vadd.f32 %v334, %v462
    %v464 = vpop.f32.mrb[0].mxu0
    %465 = vmatprep.mubr.f32.mxu0 0.0
    %466 = vmatmul.mubr.f32.gmra.mrb[0].mxu0 %v364
    %v467 = vpop.f32.mrb[0].mxu0
    %v468 = vadd.f32 %v339, %v467
    %v469 = vpop.f32.mrb[0].mxu0
    %470 = vdwg.mxu0
    %v471 = vtanh.pop %v433
    %v472 = vtanh.pop %v438
    %v473 = vtanh.pop %v443
    %v474 = vtanh.pop %v448
    %v475 = vtanh.pop %v453
    %v476 = vtanh.pop %v458
    %v477 = vtanh.pop %v463
    %v478 = vtanh.pop %v468
    %v479 = vld [vmem:[%s5] sm:$0xff]
    %v480 = vld [vmem:[%s6] sm:$0xff]
    %482 = vset.pattern.permute.xlu0 0
    %483 = vperm.xlu0 %482, %v480
    %v484 = vpop.permute.xlu0 %483
    %v487 = vsel %vm341, %v479, 0
    %489 = vmatprep.subr.mxu0 0.0
    %490 = vmatpush1.msra.mxu0 %v471
    %491 = vmatprep.subr.mxu0 0.0
    %492 = vmatpush1.msra.mxu0 %v472
    %493 = vmatprep.subr.mxu0 0.0
    %494 = vmatpush1.msra.mxu0 %v473
    %495 = vmatprep.subr.mxu0 0.0
    %496 = vmatpush1.msra.mxu0 %v474
    %497 = vmatprep.subr.mxu0 0.0
    %498 = vmatpush1.msra.mxu0 %v475
    %499 = vmatprep.subr.mxu0 0.0
    %500 = vmatpush1.msra.mxu0 %v476
    %501 = vmatprep.subr.mxu0 0.0
    %502 = vmatpush1.msra.mxu0 %v477
    %503 = vmatprep.subr.mxu0 0.0
    %504 = vmatpush1.msra.mxu0 %v478
    %505 = vmatprep.subr.mxu0 0.0
    %506 = vmatpush1.msra.mxu0 0.0
    %507 = vmatprep.subr.mxu0 0.0
    %508 = vmatpush1.msra.mxu0 0.0
    %509 = vmatprep.subr.mxu0 0.0
    %510 = vmatpush1.msra.mxu0 0.0
    %511 = vmatprep.subr.mxu0 0.0
    %512 = vmatpush1.msra.mxu0 0.0
    %513 = vmatprep.subr.mxu0 0.0
    %514 = vmatpush1.msra.mxu0 0.0
    %515 = vmatprep.subr.mxu0 0.0
    %516 = vmatpush1.msra.mxu0 0.0
    %517 = vmatprep.subr.mxu0 0.0
    %518 = vmatpush1.msra.mxu0 0.0
    %519 = vmatprep.subr.mxu0 0.0
    %520 = vmatpush1.msra.mxu0 0.0
    %521 = vmatprep.subr.mxu0 0.0
    %522 = vmatpush1.msra.mxu0 0.0
    %523 = vmatprep.subr.mxu0 0.0
    %524 = vmatpush1.msra.mxu0 0.0
    %525 = vmatprep.subr.mxu0 0.0
    %526 = vmatpush1.msra.mxu0 0.0
    %527 = vmatprep.subr.mxu0 0.0
    %528 = vmatpush1.msra.mxu0 0.0
    %529 = vmatprep.subr.mxu0 0.0
    %530 = vmatpush1.msra.mxu0 0.0
    %531 = vmatprep.subr.mxu0 0.0
    %532 = vmatpush1.msra.mxu0 0.0
    %533 = vmatprep.subr.mxu0 0.0
    %534 = vmatpush1.msra.mxu0 0.0
    %535 = vmatprep.subr.mxu0 0.0
    %536 = vmatpush1.msra.mxu0 0.0
    %537 = vmatprep.subr.mxu0 0.0
    %538 = vmatpush1.msra.mxu0 0.0
    %539 = vmatprep.subr.mxu0 0.0
    %540 = vmatpush1.msra.mxu0 0.0
    %541 = vmatprep.subr.mxu0 0.0
    %542 = vmatpush1.msra.mxu0 0.0
    %543 = vmatprep.subr.mxu0 0.0
    %544 = vmatpush1.msra.mxu0 0.0
    %545 = vmatprep.subr.mxu0 0.0
    %546 = vmatpush1.msra.mxu0 0.0
    %547 = vmatprep.subr.mxu0 0.0
    %548 = vmatpush1.msra.mxu0 0.0
    %549 = vmatprep.subr.mxu0 0.0
    %550 = vmatpush1.msra.mxu0 0.0
    %551 = vmatprep.subr.mxu0 0.0
    %552 = vmatpush1.msra.mxu0 0.0
    %553 = vmatprep.mubr.f32.mxu0 0.0
    %554 = vmatmul.mubr.f32.gmra.mrb[0].mxu0 %v487
    %v555 = vpop.f32.mrb[0].mxu0
    %v556 = vadd.f32 %v484, %v555
    %v557 = vpop.f32.mrb[0].mxu0
    %558 = vdwg.mxu0
    %v559 = vrot.slane %v556, 4
    %v560 = vmax.f32 %v556, %v559
    %v561 = vrot.slane %v560, 2
    %v562 = vmax.f32 %v560, %v561
    %v563 = vrot.slane %v562, 1
    %v564 = vmax.f32 %v562, %v563
    %v565 = vsub.f32 %v556, %v564
    %v566 = vmul.f32 %v565, 1.442695
    %v567 = vpow.pop %v566
    %v568 = vrot.slane %v567, 4
    %v569 = vadd.f32 %v567, %v568
    %v570 = vrot.slane %v569, 2
    %v571 = vadd.f32 %v569, %v570
    %v572 = vrot.slane %v571, 1
    %v573 = vadd.f32 %v571, %v572
    %v574 = vrcp.pop %v573
    %v575 = vmul.f32 %v567, %v574
    %576 = vst [vmem:[#allocation2] sm:$0xff] %v575
    // Predicated region
    $region30: #{tpu_custom_call.1} parent=1 // pred_check
      _
    $region31: #{tpu_custom_call.1} parent=1 // pred_check_branch
      %578 = sbr.rel (0) target = $region33
    $region32: #{tpu_custom_call.1} parent=1 // pred_region
      %s580 = ssub.s32 128, 128
      %581 = vsyncadd [#allocation3], %s580
      %s583 = sshll.u32 [#allocation2], 4
      %s584 = int_to_ptr.vmem [resolvable:$true] %s583
      %586 = dma.vmem_to_hbm [thread:$0]  %s584, 128, %s7, [#allocation3]
    $region33: #{tpu_custom_call.1} parent=1 // pred_fallthru
      _
    // Predicated region
    $region34: #{tpu_custom_call.1} parent=1 // pred_check
      _
    $region35: #{tpu_custom_call.1} parent=1 // pred_check_branch
      %588 = sbr.rel (0) target = $region37
    $region36: #{tpu_custom_call.1} parent=1 // pred_region
      %589 = dma.done [#allocation3], 128
    $region37: #{tpu_custom_call.1} parent=1 // pred_fallthru
      _
    %590 = vsyncpa [#allocation3], 1

</llo_original>
